<compile_context>
chip_gen: v7x
topology: tpu7x:2x2x1
jax: 0.10.0
libtpu: 0.0.40
codegen_flags: <defaults>
</compile_context>

<pallas_src>
import functools

import jax
import jax.numpy as jnp
from jax.experimental import pallas as pl
from jax.experimental.pallas import tpu as pltpu


def _focal_loss_kernel(x_ref, tgt_ref, w_ref, out_ref, *, gamma):
    x = x_ref[...].astype(jnp.float32)                 # [Tn, C]
    tn, c = x.shape

    # --- log_softmax pieces (numerically stable) ---
    m = jnp.max(x, axis=1, keepdims=True)              # [Tn, 1]
    shifted = x - m                                    # [Tn, C]
    sumexp = jnp.sum(jnp.exp(shifted), axis=1, keepdims=True)   # [Tn, 1]
    lse = jnp.log(sumexp)                              # [Tn, 1]

    # --- gather target column via one-hot (no dynamic gather on TPU) ---
    tgt = tgt_ref[...]                                 # [Tn, 1] int32
    col = jax.lax.broadcasted_iota(jnp.int32, (tn, c), 1)
    onehot = (col == tgt).astype(jnp.float32)          # [Tn, C]

    picked_shift = jnp.sum(onehot * shifted, axis=1, keepdims=True)   # [Tn, 1]
    w_t = jnp.sum(onehot * w_ref[...], axis=1, keepdims=True)         # [Tn, 1]

    # --- focal modulation on the gathered (per-row) values only ---
    logpt_t = picked_shift - lse                       # [Tn, 1]
    pt_t = jnp.exp(logpt_t)                            # [Tn, 1]
    omt = jnp.maximum(1.0 - pt_t, 0.0)                 # clamp: pow(neg eps) -> NaN

    g = float(gamma)
    if g == 0.0:
        focal = logpt_t
    elif g.is_integer() and 0.0 < g <= 8.0:
        f = omt
        for _ in range(int(g) - 1):                    # VPU multiplies, no EUP pow
            f = f * omt
        focal = f * logpt_t
    else:
        focal = (omt ** g) * logpt_t

    # nll_loss(..., reduction='none')
    out_ref[...] = (-(w_t * focal)).astype(out_ref.dtype)


def focal_loss(x, target, gamma=2.0, weight=None, tile_n=512):
    """x: [N, C] float (any float dtype), target: [N] int -> per-sample loss [N] f32."""
    n, c = x.shape
    if weight is None:
        weight = jnp.ones((c,), dtype=jnp.float32)
    w2d = weight.astype(jnp.float32).reshape(1, c)
    tgt2d = target.astype(jnp.int32).reshape(n, 1)
    # NOTE: x is intentionally NOT cast here; the kernel casts the VMEM tile.

    # Row tile: multiple of 8 (sublane), capped by the requested tile size.
    tile = int(min(tile_n, pl.cdiv(n, 8) * 8))
    n_pad = pl.cdiv(n, tile) * tile
    if n_pad != n:
        x = jnp.pad(x, ((0, n_pad - n), (0, 0)))
        tgt2d = jnp.pad(tgt2d, ((0, n_pad - n), (0, 0)))   # class 0 for pad rows

    grid = (n_pad // tile,)

    # 2 buffers for x (dominant) + small target/out/weight buffers + slack.
    tile_bytes = tile * c * x.dtype.itemsize
    vmem_limit = int(min(48 * 2**20, max(8 * 2**20, 4 * tile_bytes + 2 * 2**20)))

    out = pl.pallas_call(
        functools.partial(_focal_loss_kernel, gamma=float(gamma)),
        out_shape=jax.ShapeDtypeStruct((n_pad, 1), jnp.float32),
        grid=grid,
        in_specs=[
            pl.BlockSpec((tile, c), lambda i: (i, 0)),   # x rows
            pl.BlockSpec((tile, 1), lambda i: (i, 0)),   # target rows
            pl.BlockSpec((1, c), lambda i: (0, 0)),      # class weights (pinned)
        ],
        out_specs=pl.BlockSpec((tile, 1), lambda i: (i, 0)),
        compiler_params=pltpu.CompilerParams(
            dimension_semantics=("parallel",),
            vmem_limit_bytes=vmem_limit,
        ),
    )(x, tgt2d, w2d)
    return out[:n, 0]


def _focal_loss_ref(x, target, gamma=2.0, weight=None):
    """Pure-JAX reference mirroring the PyTorch module."""
    logpt = jax.nn.log_softmax(x.astype(jnp.float32), axis=1)
    pt = jnp.exp(logpt)
    logpt = ((1.0 - pt) ** gamma) * logpt
    picked = jnp.take_along_axis(logpt, target[:, None].astype(jnp.int32), axis=1)[:, 0]
    if weight is None:
        w = jnp.ones_like(picked)
    else:
        w = weight.astype(jnp.float32)[target]
    return -(w * picked)


if __name__ == "__main__":
    key = jax.random.PRNGKey(0)

    # Case 1: module's canonical small shape, integer gamma, with class weights.
    N, C = 8, 16
    kx, kt, kw = jax.random.split(key, 3)
    x = jax.random.normal(kx, (N, C), dtype=jnp.float32)
    target = jax.random.randint(kt, (N,), 0, C, dtype=jnp.int32)
    weight = 0.5 + jax.random.uniform(kw, (C,), dtype=jnp.float32)

    loss = focal_loss(x, target, gamma=2.0, weight=weight)
    jax.block_until_ready(loss)
    ref = _focal_loss_ref(x, target, gamma=2.0, weight=weight)
    assert loss.shape == (N,)
    assert jnp.allclose(loss, ref, atol=1e-5, rtol=1e-4), (loss, ref)

    # Case 2: non-multiple-of-tile N (exercises padding + slicing), float gamma,
    # no class weights, bf16 inputs (stay bf16 into the kernel).
    N2, C2 = 20, 16
    kx2, kt2 = jax.random.split(jax.random.PRNGKey(1), 2)
    x2 = jax.random.normal(kx2, (N2, C2), dtype=jnp.bfloat16)
    target2 = jax.random.randint(kt2, (N2,), 0, C2, dtype=jnp.int32)

    loss2 = focal_loss(x2, target2, gamma=1.5, weight=None)
    jax.block_until_ready(loss2)
    ref2 = _focal_loss_ref(x2, target2, gamma=1.5, weight=None)
    assert loss2.shape == (N2,)
    assert jnp.allclose(loss2, ref2, atol=2e-3, rtol=2e-2), (loss2, ref2)

    print("KERNEL_OK")
</pallas_src>

<mosaic_0001>
module attributes {stable_mosaic.version = 11 : i64} {
  func.func @_focal_loss_kernel(%arg0: i32, %arg1: memref<8x16xf32, #tpu.memory_space<vmem>>, %arg2: memref<8x1xi32, #tpu.memory_space<vmem>>, %arg3: memref<1x16xf32, #tpu.memory_space<vmem>>, %arg4: memref<8x1xf32, #tpu.memory_space<vmem>>) attributes {dimension_semantics = [#tpu.dimension_semantics<parallel>], iteration_bounds = array<i64: 1>, scalar_prefetch = 0 : i64, scratch_operands = 0 : i64, tpu.core_type = #tpu.core_type<tc>, window_params = [{transform_indices = @transform_0, window_bounds = array<i64: 8, 16>}, {transform_indices = @transform_1, window_bounds = array<i64: 8, 1>}, {pipeline_mode = #tpu.pipeline_mode<synchronous>, transform_indices = @transform_2, window_bounds = array<i64: 1, 16>}, {transform_indices = @transform_3, window_bounds = array<i64: 8, 1>}]} {
    %c0 = arith.constant 0 : index
    %c0_0 = arith.constant 0 : index
    %0 = vector.load %arg1[%c0, %c0_0] : memref<8x16xf32, #tpu.memory_space<vmem>>, vector<8x16xf32>
    %cst = arith.constant dense<0xFF800000> : vector<8xf32>
    %1 = vector.multi_reduction <maximumf>, %0, %cst [1] : vector<8x16xf32> to vector<8xf32>
    %2 = vector.shape_cast %1 : vector<8xf32> to vector<8x1xf32>
    %3 = vector.broadcast %2 : vector<8x1xf32> to vector<8x16xf32>
    %4 = arith.subf %0, %3 : vector<8x16xf32>
    %5 = math.exp %4 : vector<8x16xf32>
    %cst_1 = arith.constant dense<0.000000e+00> : vector<8xf32>
    %6 = vector.multi_reduction <add>, %5, %cst_1 [1] : vector<8x16xf32> to vector<8xf32>
    %7 = vector.shape_cast %6 : vector<8xf32> to vector<8x1xf32>
    %8 = math.log %7 : vector<8x1xf32>
    %c0_2 = arith.constant 0 : index
    %c0_3 = arith.constant 0 : index
    %9 = vector.load %arg2[%c0_2, %c0_3] : memref<8x1xi32, #tpu.memory_space<vmem>>, vector<8x1xi32>
    %10 = tpu.iota {dimensions = array<i32: 1>} : vector<8x16xi32>
    %11 = vector.broadcast %9 : vector<8x1xi32> to vector<8x16xi32>
    %12 = arith.cmpi eq, %10, %11 : vector<8x16xi32>
    %13 = arith.extui %12 : vector<8x16xi1> to vector<8x16xi32>
    %14 = arith.sitofp %13 : vector<8x16xi32> to vector<8x16xf32>
    %15 = arith.mulf %14, %4 : vector<8x16xf32>
    %cst_4 = arith.constant dense<0.000000e+00> : vector<8xf32>
    %16 = vector.multi_reduction <add>, %15, %cst_4 [1] : vector<8x16xf32> to vector<8xf32>
    %17 = vector.shape_cast %16 : vector<8xf32> to vector<8x1xf32>
    %c0_5 = arith.constant 0 : index
    %c0_6 = arith.constant 0 : index
    %18 = vector.load %arg3[%c0_5, %c0_6] : memref<1x16xf32, #tpu.memory_space<vmem>>, vector<1x16xf32>
    %19 = vector.broadcast %18 : vector<1x16xf32> to vector<8x16xf32>
    %20 = arith.mulf %14, %19 : vector<8x16xf32>
    %cst_7 = arith.constant dense<0.000000e+00> : vector<8xf32>
    %21 = vector.multi_reduction <add>, %20, %cst_7 [1] : vector<8x16xf32> to vector<8xf32>
    %22 = vector.shape_cast %21 : vector<8xf32> to vector<8x1xf32>
    %23 = arith.subf %17, %8 : vector<8x1xf32>
    %24 = math.exp %23 : vector<8x1xf32>
    %cst_8 = arith.constant 1.000000e+00 : f32
    %25 = vector.broadcast %cst_8 : f32 to vector<8x1xf32>
    %26 = arith.subf %25, %24 : vector<8x1xf32>
    %cst_9 = arith.constant 0.000000e+00 : f32
    %27 = vector.broadcast %cst_9 : f32 to vector<8x1xf32>
    %28 = arith.maximumf %26, %27 : vector<8x1xf32>
    %29 = arith.mulf %28, %28 : vector<8x1xf32>
    %30 = arith.mulf %29, %23 : vector<8x1xf32>
    %31 = arith.mulf %22, %30 : vector<8x1xf32>
    %cst_10 = arith.constant 0.000000e+00 : f32
    %32 = vector.broadcast %cst_10 : f32 to vector<8x1xf32>
    %33 = arith.subf %32, %31 : vector<8x1xf32>
    %c0_11 = arith.constant 0 : index
    %c0_12 = arith.constant 0 : index
    %34 = vector.load %arg4[%c0_11, %c0_12] : memref<8x1xf32, #tpu.memory_space<vmem>>, vector<8x1xf32>
    tpu.vector_store %arg4[%c0_11, %c0_12], %33 {strides = array<i32>} : memref<8x1xf32, #tpu.memory_space<vmem>>, vector<8x1xf32>,
    return
  }
  func.func @transform_0(%arg0: i32) -> (i32, i32) {
    %c0_i32 = arith.constant 0 : i32
    %c0_i32_0 = arith.constant 0 : i32
    return %arg0, %c0_i32 : i32, i32
  }
  func.func @transform_1(%arg0: i32) -> (i32, i32) {
    %c0_i32 = arith.constant 0 : i32
    %c0_i32_0 = arith.constant 0 : i32
    return %arg0, %c0_i32 : i32, i32
  }
  func.func @transform_2(%arg0: i32) -> (i32, i32) {
    %c0_i32 = arith.constant 0 : i32
    %c0_i32_0 = arith.constant 0 : i32
    %c0_i32_1 = arith.constant 0 : i32
    return %c0_i32, %c0_i32_0 : i32, i32
  }
  func.func @transform_3(%arg0: i32) -> (i32, i32) {
    %c0_i32 = arith.constant 0 : i32
    %c0_i32_0 = arith.constant 0 : i32
    return %arg0, %c0_i32 : i32, i32
  }
}

</mosaic_0001>

<llo_original>
// kernel: tpu_custom_call.1
$region0: #{tpu_custom_call.1}
  #allocation0 [shape = 'u32[]', space=smem, size = 0x4, offset = 0x4, fixed_abs, tag = 'smem constant byte address 0x4 - core index']
  #allocation1 [shape = 'u32[144,128]{1,0:T(1,128)}', space=vmem, size = 0x12000, scoped, tag = 'internal scratch']
  %s0 = inlined_call_operand.vmem [shape: f32[8,16], index: 0, kind: input, shape index: {}]
  %s1 = inlined_call_operand.vmem [shape: s32[8,1], index: 1, kind: input, shape index: {}]
  %s2 = inlined_call_operand.vmem [shape: f32[1,16], index: 2, kind: input, shape index: {}]
  %s3 = inlined_call_operand.vmem [shape: f32[8,1], index: 3, kind: output, shape index: {}]
  %s4 = sld [smem:[#allocation0]]
  $region22: #{tpu_custom_call.1} parent=0
    _
  %s6 = ssub.s32 1, %s4
  %s7 = scalar_select 0, %s6, %s4
  // Predicated region
  $region2: #{tpu_custom_call.1} parent=0 // pred_check
    _
  $region3: #{tpu_custom_call.1} parent=0 // pred_check_branch
    %9 = sbr.rel (0) target = $region5
  $region4: #{tpu_custom_call.1} parent=0 // pred_region
    _
  $region5: #{tpu_custom_call.1} parent=0 // pred_fallthru
    _
  // Predicated region
  $region6: #{tpu_custom_call.1} parent=0 // pred_check
    _
  $region7: #{tpu_custom_call.1} parent=0 // pred_check_branch
    %11 = sbr.rel (0) target = $region9
  $region8: #{tpu_custom_call.1} parent=0 // pred_region
    _
  $region9: #{tpu_custom_call.1} parent=0 // pred_fallthru
    _
  // Predicated region
  $region10: #{tpu_custom_call.1} parent=0 // pred_check
    _
  $region11: #{tpu_custom_call.1} parent=0 // pred_check_branch
    %13 = sbr.rel (0) target = $region13
  $region12: #{tpu_custom_call.1} parent=0 // pred_region
    _
  $region13: #{tpu_custom_call.1} parent=0 // pred_fallthru
    _
  %v14 = vld [vmem:[%s0] sm:$0xff]
  %vm15 = vcmask 130048
  %v16 = vsel %vm15, %v14, -inf
  %17 = vmax.xlane.f32.xlu0 %v16
  %v18 = vpop.xlane.xlu0 %17
  %v19 = vsub.f32 %v14, %v18
  %v20 = vmul.f32 %v19, 1.442695
  %v21 = vpow.pop %v20
  %v22 = vsel %vm15, %v21, 0.0
  %23 = vadd.xlane.f32.xlu0 %v22
  %v24 = vpop.xlane.xlu0 %23
  %v25 = vlog2.pop %v24
  %v26 = vmul.f32 %v25, 0.6931472
  %v27 = vld [vmem:[%s1] sm:$0xff]
  %v28 = vlaneseq
  %v29 = vand.u32 %v28, 127
  %30 = vset.pattern.permute.xlu0 0
  %31 = vperm.xlu0 %30, %v27
  %v32 = vpop.permute.xlu0 %31
  %vm33 = vcmp.eq.s32.totalorder %v29, %v32
  %v34 = vsel %vm33, 1, 0
  %v35 = vcvt.s32.f32 %v34
  %v36 = vmul.f32 %v35, %v19
  %v37 = vsel %vm15, %v36, 0.0
  %38 = vadd.xlane.f32.xlu0 %v37
  %v39 = vpop.xlane.xlu0 %38
  %v40 = vld [vmem:[%s2] sm:$0x1]
  %v42 = vlaneseq
  %v43 = vshrl.u32 %v42, 7
  %v44 = vsub.s32 0, %v43
  %v45 = vrot.slane %v40, %v44
  %v47 = vmul.f32 %v35, %v45
  %v48 = vsel %vm15, %v47, 0.0
  %49 = vadd.xlane.f32.xlu0 %v48
  %v50 = vpop.xlane.xlu0 %49
  %v51 = vsub.f32 %v39, %v26
  %v52 = vmul.f32 %v51, 1.442695
  %v53 = vpow.pop %v52
  %v54 = vsub.f32 1.0, %v53
  %v55 = vmax.f32 %v54, 0.0
  %v56 = vmul.f32 %v55, %v55
  %v57 = vmul.f32 %v56, %v51
  %v58 = vmul.f32 %v50, %v57
  %v59 = vsub.f32 0.0, %v58
  %vm60 = vcmask 7168
  %61 = vst.msk [vmem:[%s3] sm:$0xff] %vm60, %v59
  // Predicated region
  $region14: #{tpu_custom_call.1} parent=0 // pred_check
    _
  $region15: #{tpu_custom_call.1} parent=0 // pred_check_branch
    %63 = sbr.rel (0) target = $region17
  $region16: #{tpu_custom_call.1} parent=0 // pred_region
    _
  $region17: #{tpu_custom_call.1} parent=0 // pred_fallthru
    _
  // Predicated region
  $region18: #{tpu_custom_call.1} parent=0 // pred_check
    _
  $region19: #{tpu_custom_call.1} parent=0 // pred_check_branch
    %65 = sbr.rel (0) target = $region21
  $region20: #{tpu_custom_call.1} parent=0 // pred_region
    _
  $region21: #{tpu_custom_call.1} parent=0 // pred_fallthru
    _

</llo_original>
